<compile_context>
chip_gen: v7x
topology: tpu7x:2x2x1
jax: 0.10.0
libtpu: 0.0.40
codegen_flags: <defaults>
</compile_context>

<pallas_src>
import functools
import math

import jax
import jax.numpy as jnp
from jax.experimental import pallas as pl
from jax.experimental.pallas import tpu as pltpu


# ------------------------------- kernel -------------------------------------


def _mse_rowsum_kernel(o_ref, t_ref, loss_ref, acc_ref, *, inv_total):
    """Accumulate per-row sum of squared differences across the N-reduction axis.

    o_ref, t_ref : (Rt, Nt) VMEM input blocks.
    loss_ref     : (Rt, 1)  VMEM output block (resident across reduction axis).
    acc_ref      : (Rt, 1)  f32 VMEM scratch accumulator.
    """
    j = pl.program_id(1)                     # reduction axis (last grid axis)

    @pl.when(j == 0)
    def _():
        acc_ref[...] = jnp.zeros_like(acc_ref)

    diff = o_ref[...].astype(jnp.float32) - t_ref[...].astype(jnp.float32)
    acc_ref[...] += jnp.sum(diff * diff, axis=1, keepdims=True)

    @pl.when(j == pl.num_programs(1) - 1)
    def _():
        # multiply by precomputed reciprocal of the TRUE (unpadded) element count
        loss_ref[...] = acc_ref[...] * inv_total


# ------------------------------- wrapper -------------------------------------


def _round_up(x, m):
    return ((x + m - 1) // m) * m


_ROW_TILE_CAP = 64                       # rows per block (multiple of 8)
_BLOCK_BYTES_TARGET = 2 * 1024 * 1024    # per-input block <= ~2 MiB
                                         # -> 2 inputs x 2 pipeline buffers ~ 8 MiB,
                                         #    fits scoped VMEM on v5e/v6e/v7x.


def _choose_tiles(num_rows, n, itemsize):
    """Pick (Rt, Nt): Rt multiple of 8, Nt a large multiple of 128."""
    n_row_blocks = pl.cdiv(num_rows, _ROW_TILE_CAP)
    rt = _round_up(pl.cdiv(num_rows, n_row_blocks), 8)
    nt_cap = max(512, (_BLOCK_BYTES_TARGET // (rt * itemsize)) // 128 * 128)
    n_red_steps = pl.cdiv(n, nt_cap)
    nt = _round_up(pl.cdiv(n, n_red_steps), 128)
    return rt, nt


def _fused_mse_rows(out2d, tgt2d, true_total):
    """(rows, N) pair -> (rows,) per-row mean squared error, via one pallas_call."""
    assert out2d.shape == tgt2d.shape
    num_rows, n = out2d.shape
    rt, nt = _choose_tiles(num_rows, n, jnp.dtype(out2d.dtype).itemsize)
    rows_pad = _round_up(num_rows, rt)
    n_pad = _round_up(n, nt)

    if (rows_pad, n_pad) != (num_rows, n):
        pad = ((0, rows_pad - num_rows), (0, n_pad - n))
        out2d = jnp.pad(out2d, pad)   # zero padding -> zero diff -> sum unaffected
        tgt2d = jnp.pad(tgt2d, pad)

    grid = (rows_pad // rt, n_pad // nt)
    kernel = functools.partial(_mse_rowsum_kernel,
                               inv_total=1.0 / float(true_total))

    res = pl.pallas_call(
        kernel,
        out_shape=jax.ShapeDtypeStruct((rows_pad, 1), jnp.float32),
        grid_spec=pltpu.PrefetchScalarGridSpec(
            num_scalar_prefetch=0,
            grid=grid,
            in_specs=[
                pl.BlockSpec((rt, nt), lambda i, j: (i, j)),
                pl.BlockSpec((rt, nt), lambda i, j: (i, j)),
            ],
            out_specs=pl.BlockSpec((rt, 1), lambda i, j: (i, 0)),
            scratch_shapes=[pltpu.VMEM((rt, 1), jnp.float32)],
        ),
        compiler_params=pltpu.CompilerParams(
            # batch/rows axis parallel (megacore on v7x), reduction axis arbitrary+last
            dimension_semantics=("parallel", "arbitrary"),
            vmem_limit_bytes=32 * 1024 * 1024,
        ),
    )(out2d, tgt2d)
    return res[:num_rows, 0]


# ------------------------------- module --------------------------------------


class LambdaL2Loss:
    """JAX/Pallas port of the PyTorch LambdaL2Loss module."""

    def __init__(self, cfg, *, min_pallas_elements=1024):
        self.rec_weight = cfg['rec_weight']
        # below this total-element count, launch overhead dominates: use plain XLA.
        self.min_pallas_elements = min_pallas_elements

    def __call__(self, output_, target_):
        assert output_.keys() == target_.keys(), (
            'output and target must have the same keys!')
        loss = {}

        # Group keys with identical flattened length & dtype -> one fused pallas_call.
        groups = {}
        for k in output_.keys():
            o, t = output_[k], target_[k]
            assert o.shape == t.shape, (
                'output and target must have the same shapes!')
            b = o.shape[0]
            n = math.prod(o.shape[1:])          # = C * H (= H * 1 * C of the reference)
            if o.size <= self.min_pallas_elements:
                # tiny tensors: plain XLA fused reduce is strictly faster than a kernel launch
                diff = (o.astype(jnp.float32) - t.astype(jnp.float32)).reshape(b, n)
                loss[k] = jnp.sum(diff * diff, axis=1) / n
            else:
                groups.setdefault((n, jnp.dtype(o.dtype)), []).append(k)

        for (n, _dtype), keys in groups.items():
            outs = jnp.concatenate(
                [output_[k].reshape(output_[k].shape[0], n) for k in keys], axis=0)
            tgts = jnp.concatenate(
                [target_[k].reshape(target_[k].shape[0], n) for k in keys], axis=0)
            per_row = _fused_mse_rows(outs, tgts, true_total=n)
            off = 0
            for k in keys:
                b = output_[k].shape[0]
                loss[k] = per_row[off:off + b]
                off += b

        return (loss, self.rec_weight)


# ------------------------------- reference -----------------------------------


def _reference(output_, target_, rec_weight):
    """Pure-JAX reference mirroring the PyTorch forward exactly."""
    loss = {}
    for k in output_.keys():
        o = jnp.transpose(output_[k], (0, 2, 1))[:, :, None, :]   # (B, H, 1, C)
        t = jnp.transpose(target_[k], (0, 2, 1))[:, :, None, :]
        sq = (o - t) ** 2
        _loss = jnp.sum(sq, axis=(1, 2, 3))
        total = o.shape[1] * o.shape[2] * o.shape[3]
        loss[k] = _loss / total
    return (loss, rec_weight)


# ------------------------------- test ----------------------------------------


if __name__ == "__main__":
    key = jax.random.PRNGKey(0)
    cfg = {'rec_weight': 1.0}  # deterministic synthetic config

    # 'x' and 'y' share flattened length -> fused into one pallas_call.
    # 'z' exercises ragged padding (rows not /8, lanes not /128).
    # 'w' is tiny and takes the plain-XLA fallback path.
    shapes = {
        'x': (2, 4, 512),
        'y': (2, 4, 512),
        'z': (3, 8, 300),
        'w': (2, 4, 16),
    }
    subkeys = jax.random.split(key, 2 * len(shapes))
    output_dict, target_dict = {}, {}
    for idx, (name, shp) in enumerate(shapes.items()):
        output_dict[name] = jax.random.normal(subkeys[2 * idx], shp, dtype=jnp.float32)
        target_dict[name] = jax.random.normal(subkeys[2 * idx + 1], shp, dtype=jnp.float32)

    module = LambdaL2Loss(cfg)
    loss, rec_weight = module(output_dict, target_dict)
    for v in loss.values():
        jax.block_until_ready(v)

    ref_loss, _ = _reference(output_dict, target_dict, cfg['rec_weight'])
    for k in loss:
        assert loss[k].shape == ref_loss[k].shape, (
            f"shape mismatch on key {k}: {loss[k].shape} vs {ref_loss[k].shape}")
        assert jnp.allclose(loss[k], ref_loss[k], rtol=1e-5, atol=1e-5), (
            f"mismatch on key {k}: {loss[k]} vs {ref_loss[k]}")

    print("KERNEL_OK")
</pallas_src>

<mosaic_0001>
module attributes {stable_mosaic.version = 11 : i64} {
  func.func @_mse_rowsum_kernel(%arg0: i32, %arg1: i32, %arg2: memref<8x2048xf32, #tpu.memory_space<vmem>>, %arg3: memref<8x2048xf32, #tpu.memory_space<vmem>>, %arg4: memref<8x1xf32, #tpu.memory_space<vmem>>, %arg5: memref<8x1xf32, #tpu.memory_space<vmem>>) attributes {dimension_semantics = [#tpu.dimension_semantics<parallel>, #tpu.dimension_semantics<arbitrary>], iteration_bounds = array<i64: 1, 1>, scalar_prefetch = 0 : i64, scratch_operands = 1 : i64, tpu.core_type = #tpu.core_type<tc>, window_params = [{transform_indices = @transform_0, window_bounds = array<i64: 8, 2048>}, {transform_indices = @transform_1, window_bounds = array<i64: 8, 2048>}, {transform_indices = @transform_2, window_bounds = array<i64: 8, 1>}]} {
    %c0_i32 = arith.constant 0 : i32
    %0 = arith.cmpi eq, %arg1, %c0_i32 : i32
    %1 = arith.extui %0 : i1 to i32
    %c0_i32_0 = arith.constant 0 : i32
    %2 = arith.cmpi ne, %1, %c0_i32_0 : i32
    scf.if %2 {
      %cst_10 = arith.constant 0.000000e+00 : f32
      %15 = vector.broadcast %cst_10 : f32 to vector<8x1xf32>
      %c0_11 = arith.constant 0 : index
      %c0_12 = arith.constant 0 : index
      %16 = vector.load %arg5[%c0_11, %c0_12] : memref<8x1xf32, #tpu.memory_space<vmem>>, vector<8x1xf32>
      tpu.vector_store %arg5[%c0_11, %c0_12], %15 {strides = array<i32>} : memref<8x1xf32, #tpu.memory_space<vmem>>, vector<8x1xf32>,
    } else {
    }
    %c0 = arith.constant 0 : index
    %c0_1 = arith.constant 0 : index
    %3 = vector.load %arg2[%c0, %c0_1] : memref<8x2048xf32, #tpu.memory_space<vmem>>, vector<8x2048xf32>
    %c0_2 = arith.constant 0 : index
    %c0_3 = arith.constant 0 : index
    %4 = vector.load %arg3[%c0_2, %c0_3] : memref<8x2048xf32, #tpu.memory_space<vmem>>, vector<8x2048xf32>
    %5 = arith.subf %3, %4 : vector<8x2048xf32>
    %c0_4 = arith.constant 0 : index
    %c0_5 = arith.constant 0 : index
    %6 = vector.load %arg5[%c0_4, %c0_5] : memref<8x1xf32, #tpu.memory_space<vmem>>, vector<8x1xf32>
    %7 = arith.mulf %5, %5 : vector<8x2048xf32>
    %cst = arith.constant dense<0.000000e+00> : vector<8xf32>
    %8 = vector.multi_reduction <add>, %7, %cst [1] : vector<8x2048xf32> to vector<8xf32>
    %9 = vector.shape_cast %8 : vector<8xf32> to vector<8x1xf32>
    %10 = arith.addf %6, %9 : vector<8x1xf32>
    %c0_6 = arith.constant 0 : index
    %c0_7 = arith.constant 0 : index
    %11 = vector.load %arg5[%c0_6, %c0_7] : memref<8x1xf32, #tpu.memory_space<vmem>>, vector<8x1xf32>
    tpu.vector_store %arg5[%c0_6, %c0_7], %10 {strides = array<i32>} : memref<8x1xf32, #tpu.memory_space<vmem>>, vector<8x1xf32>,
    %c0_i32_8 = arith.constant 0 : i32
    %12 = arith.cmpi eq, %arg1, %c0_i32_8 : i32
    %13 = arith.extui %12 : i1 to i32
    %c0_i32_9 = arith.constant 0 : i32
    %14 = arith.cmpi ne, %13, %c0_i32_9 : i32
    scf.if %14 {
      %c0_10 = arith.constant 0 : index
      %c0_11 = arith.constant 0 : index
      %15 = vector.load %arg5[%c0_10, %c0_11] : memref<8x1xf32, #tpu.memory_space<vmem>>, vector<8x1xf32>
      %cst_12 = arith.constant 4.8828125E-4 : f32
      %16 = vector.broadcast %cst_12 : f32 to vector<8x1xf32>
      %17 = arith.mulf %15, %16 : vector<8x1xf32>
      %c0_13 = arith.constant 0 : index
      %c0_14 = arith.constant 0 : index
      %18 = vector.load %arg4[%c0_13, %c0_14] : memref<8x1xf32, #tpu.memory_space<vmem>>, vector<8x1xf32>
      tpu.vector_store %arg4[%c0_13, %c0_14], %17 {strides = array<i32>} : memref<8x1xf32, #tpu.memory_space<vmem>>, vector<8x1xf32>,
    } else {
    }
    return
  }
  func.func @transform_0(%arg0: i32, %arg1: i32) -> (i32, i32) {
    %c0_i32 = arith.constant 0 : i32
    return %arg0, %arg1 : i32, i32
  }
  func.func @transform_1(%arg0: i32, %arg1: i32) -> (i32, i32) {
    %c0_i32 = arith.constant 0 : i32
    return %arg0, %arg1 : i32, i32
  }
  func.func @transform_2(%arg0: i32, %arg1: i32) -> (i32, i32) {
    %c0_i32 = arith.constant 0 : i32
    %c0_i32_0 = arith.constant 0 : i32
    return %arg0, %c0_i32 : i32, i32
  }
}

</mosaic_0001>

<llo_original>
// kernel: tpu_custom_call.1
$region0: #{tpu_custom_call.1}
  #allocation0 [shape = 'u32[]', space=smem, size = 0x4, offset = 0x4, fixed_abs, tag = 'smem constant byte address 0x4 - core index']
  #allocation1 [shape = 'u32[144,128]{1,0:T(1,128)}', space=vmem, size = 0x12000, scoped, tag = 'internal scratch']
  #allocation2 [shape = 'f32[8,1]{1,0:T(8,128)}', space=vmem, size = 0x1000, scoped, tag = 'scratch operand']
  %s0 = inlined_call_operand.hbm [shape: f32[8,2048], index: 0, kind: input, shape index: {}]
  %s1 = inlined_call_operand.hbm [shape: f32[8,2048], index: 1, kind: input, shape index: {}]
  %s2 = inlined_call_operand.vmem [shape: f32[8,1], index: 2, kind: output, shape index: {}]
  %s3 = sld [smem:[#allocation0]]
  $region34: #{tpu_custom_call.1} parent=0
    _
  %s5 = ssub.s32 1, %s3
  %s6 = scalar_select 0, %s5, %s3
  $region1: #{tpu_custom_call.1} parent=0
    #allocation3 [shape = 'u8[65536]{0}', space=vmem, size = 0x10000, scoped, tag = 'input window, operand 0, single buffered']
    #allocation4 [shape = 's32[1]{0}', space=sflag, size = 0x4, scoped, tag = 'scoped memory for tpu_custom_call.1']
    #allocation5 [shape = 'u8[65536]{0}', space=vmem, size = 0x10000, scoped, tag = 'input window, operand 1, single buffered']
    #allocation6 [shape = 's32[1]{0}', space=sflag, size = 0x4, scoped, tag = 'scoped memory for tpu_custom_call.1']
    %7 = vsyncpa [#allocation4], 0
    %8 = vsyncpa [#allocation6], 0
    // Predicated region
    $region2: #{tpu_custom_call.1} parent=1 // pred_check
      _
    $region3: #{tpu_custom_call.1} parent=1 // pred_check_branch
      %10 = sbr.rel (0) target = $region5
    $region4: #{tpu_custom_call.1} parent=1 // pred_region
      %s12 = ssub.s32 2048, 2048
      %13 = vsyncadd [#allocation4], %s12
      %s15 = sshll.u32 [#allocation3], 4
      %s16 = int_to_ptr.vmem [resolvable:$true] %s15
      %18 = dma.hbm_to_vmem [thread:$0]  %s0, 2048, %s16, [#allocation4]
    $region5: #{tpu_custom_call.1} parent=1 // pred_fallthru
      _
    // Predicated region
    $region6: #{tpu_custom_call.1} parent=1 // pred_check
      _
    $region7: #{tpu_custom_call.1} parent=1 // pred_check_branch
      %20 = sbr.rel (0) target = $region9
    $region8: #{tpu_custom_call.1} parent=1 // pred_region
      %s22 = ssub.s32 2048, 2048
      %23 = vsyncadd [#allocation6], %s22
      %s25 = sshll.u32 [#allocation5], 4
      %s26 = int_to_ptr.vmem [resolvable:$true] %s25
      %28 = dma.hbm_to_vmem [thread:$0]  %s1, 2048, %s26, [#allocation6]
    $region9: #{tpu_custom_call.1} parent=1 // pred_fallthru
      _
    // Predicated region
    $region10: #{tpu_custom_call.1} parent=1 // pred_check
      _
    $region11: #{tpu_custom_call.1} parent=1 // pred_check_branch
      %30 = sbr.rel (0) target = $region13
    $region12: #{tpu_custom_call.1} parent=1 // pred_region
      %31 = dma.done [#allocation4], 2048
    $region13: #{tpu_custom_call.1} parent=1 // pred_fallthru
      _
    // Predicated region
    $region14: #{tpu_custom_call.1} parent=1 // pred_check
      _
    $region15: #{tpu_custom_call.1} parent=1 // pred_check_branch
      %33 = sbr.rel (0) target = $region17
    $region16: #{tpu_custom_call.1} parent=1 // pred_region
      %34 = dma.done [#allocation6], 2048
    $region17: #{tpu_custom_call.1} parent=1 // pred_fallthru
      _
    %p35 = scmp.eq.s32.totalorder 0, 0
    // Predicated region
    $region18: #{tpu_custom_call.1} parent=1 // pred_check
      %p36 = pneg %p35
    $region19: #{tpu_custom_call.1} parent=1 // pred_check_branch
      %38 = sbr.rel (%p36) target = $region21
    $region20: #{tpu_custom_call.1} parent=1 // pred_region
      %vm39 = vcmask 7168
      %40 = vst.msk [vmem:[#allocation2] sm:$0xff] %vm39, 0.0
    $region21: #{tpu_custom_call.1} parent=1 // pred_fallthru
      _
    %v41 = vld [vmem:[#allocation3] sm:$0xff]
    %v42 = vld [vmem:[#allocation3 + $0x8] sm:$0xff]
    %v43 = vld [vmem:[#allocation3 + $0x10] sm:$0xff]
    %v44 = vld [vmem:[#allocation3 + $0x18] sm:$0xff]
    %v45 = vld [vmem:[#allocation3 + $0x20] sm:$0xff]
    %v46 = vld [vmem:[#allocation3 + $0x28] sm:$0xff]
    %v47 = vld [vmem:[#allocation3 + $0x30] sm:$0xff]
    %v48 = vld [vmem:[#allocation3 + $0x38] sm:$0xff]
    %v49 = vld [vmem:[#allocation3 + $0x40] sm:$0xff]
    %v50 = vld [vmem:[#allocation3 + $0x48] sm:$0xff]
    %v51 = vld [vmem:[#allocation3 + $0x50] sm:$0xff]
    %v52 = vld [vmem:[#allocation3 + $0x58] sm:$0xff]
    %v53 = vld [vmem:[#allocation3 + $0x60] sm:$0xff]
    %v54 = vld [vmem:[#allocation3 + $0x68] sm:$0xff]
    %v55 = vld [vmem:[#allocation3 + $0x70] sm:$0xff]
    %v56 = vld [vmem:[#allocation3 + $0x78] sm:$0xff]
    %v57 = vld [vmem:[#allocation5] sm:$0xff]
    %v58 = vld [vmem:[#allocation5 + $0x8] sm:$0xff]
    %v59 = vld [vmem:[#allocation5 + $0x10] sm:$0xff]
    %v60 = vld [vmem:[#allocation5 + $0x18] sm:$0xff]
    %v61 = vld [vmem:[#allocation5 + $0x20] sm:$0xff]
    %v62 = vld [vmem:[#allocation5 + $0x28] sm:$0xff]
    %v63 = vld [vmem:[#allocation5 + $0x30] sm:$0xff]
    %v64 = vld [vmem:[#allocation5 + $0x38] sm:$0xff]
    %v65 = vld [vmem:[#allocation5 + $0x40] sm:$0xff]
    %v66 = vld [vmem:[#allocation5 + $0x48] sm:$0xff]
    %v67 = vld [vmem:[#allocation5 + $0x50] sm:$0xff]
    %v68 = vld [vmem:[#allocation5 + $0x58] sm:$0xff]
    %v69 = vld [vmem:[#allocation5 + $0x60] sm:$0xff]
    %v70 = vld [vmem:[#allocation5 + $0x68] sm:$0xff]
    %v71 = vld [vmem:[#allocation5 + $0x70] sm:$0xff]
    %v72 = vld [vmem:[#allocation5 + $0x78] sm:$0xff]
    %v73 = vsub.f32 %v41, %v57
    %v74 = vsub.f32 %v42, %v58
    %v75 = vsub.f32 %v43, %v59
    %v76 = vsub.f32 %v44, %v60
    %v77 = vsub.f32 %v45, %v61
    %v78 = vsub.f32 %v46, %v62
    %v79 = vsub.f32 %v47, %v63
    %v80 = vsub.f32 %v48, %v64
    %v81 = vsub.f32 %v49, %v65
    %v82 = vsub.f32 %v50, %v66
    %v83 = vsub.f32 %v51, %v67
    %v84 = vsub.f32 %v52, %v68
    %v85 = vsub.f32 %v53, %v69
    %v86 = vsub.f32 %v54, %v70
    %v87 = vsub.f32 %v55, %v71
    %v88 = vsub.f32 %v56, %v72
    %v89 = vld [vmem:[#allocation2] sm:$0xff]
    %v90 = vmul.f32 %v73, %v73
    %v91 = vmul.f32 %v74, %v74
    %v92 = vmul.f32 %v75, %v75
    %v93 = vmul.f32 %v76, %v76
    %v94 = vmul.f32 %v77, %v77
    %v95 = vmul.f32 %v78, %v78
    %v96 = vmul.f32 %v79, %v79
    %v97 = vmul.f32 %v80, %v80
    %v98 = vmul.f32 %v81, %v81
    %v99 = vmul.f32 %v82, %v82
    %v100 = vmul.f32 %v83, %v83
    %v101 = vmul.f32 %v84, %v84
    %v102 = vmul.f32 %v85, %v85
    %v103 = vmul.f32 %v86, %v86
    %v104 = vmul.f32 %v87, %v87
    %v105 = vmul.f32 %v88, %v88
    %v106 = vadd.f32 %v90, %v91
    %v107 = vadd.f32 %v106, %v92
    %v108 = vadd.f32 %v107, %v93
    %v109 = vadd.f32 %v108, %v94
    %v110 = vadd.f32 %v109, %v95
    %v111 = vadd.f32 %v110, %v96
    %v112 = vadd.f32 %v111, %v97
    %v113 = vadd.f32 %v112, %v98
    %v114 = vadd.f32 %v113, %v99
    %v115 = vadd.f32 %v114, %v100
    %v116 = vadd.f32 %v115, %v101
    %v117 = vadd.f32 %v116, %v102
    %v118 = vadd.f32 %v117, %v103
    %v119 = vadd.f32 %v118, %v104
    %v120 = vadd.f32 %v119, %v105
    %121 = vadd.xlane.f32.xlu0 %v120
    %v122 = vpop.xlane.xlu0 %121
    %v123 = vadd.f32 %v89, %v122
    %vm124 = vcmask 7168
    %125 = vst.msk [vmem:[#allocation2] sm:$0xff] %vm124, %v123
    // Predicated region
    $region22: #{tpu_custom_call.1} parent=1 // pred_check
      %p126 = pneg %p35
    $region23: #{tpu_custom_call.1} parent=1 // pred_check_branch
      %128 = sbr.rel (%p126) target = $region25
    $region24: #{tpu_custom_call.1} parent=1 // pred_region
      %v129 = vld [vmem:[#allocation2] sm:$0xff]
      %v130 = vmul.f32 %v129, 0.00048828125
      %131 = vst.msk [vmem:[%s2] sm:$0xff] %vm124, %v130
    $region25: #{tpu_custom_call.1} parent=1 // pred_fallthru
      _
    // Predicated region
    $region26: #{tpu_custom_call.1} parent=1 // pred_check
      _
    $region27: #{tpu_custom_call.1} parent=1 // pred_check_branch
      %133 = sbr.rel (0) target = $region29
    $region28: #{tpu_custom_call.1} parent=1 // pred_region
      _
    $region29: #{tpu_custom_call.1} parent=1 // pred_fallthru
      _
    // Predicated region
    $region30: #{tpu_custom_call.1} parent=1 // pred_check
      _
    $region31: #{tpu_custom_call.1} parent=1 // pred_check_branch
      %135 = sbr.rel (0) target = $region33
    $region32: #{tpu_custom_call.1} parent=1 // pred_region
      _
    $region33: #{tpu_custom_call.1} parent=1 // pred_fallthru
      _
    %136 = vsyncpa [#allocation4], 1
    %137 = vsyncpa [#allocation6], 1

</llo_original>
